<compile_context>
chip_gen: v7x
topology: tpu7x:2x2x1
jax: 0.10.0
libtpu: 0.0.40
codegen_flags: <defaults>
</compile_context>

<pallas_src>
import math
import functools

import jax
import jax.numpy as jnp
from jax.experimental import pallas as pl
from jax.experimental.pallas import tpu as pltpu


_VMEM_TILE_BUDGET = 40 << 20   # bytes of tile/scratch footprint (v7x-safe)
_VMEM_LIMIT_BYTES = 48 << 20   # scoped VMEM limit handed to Mosaic


def _round_up(x, m):
    return (x + m - 1) // m * m


def _cdiv(a, b):
    return -(-a // b)


def _mlp_kernel(x_ref, w_ref, b_ref, o_ref, acc_ref):
    # x_ref: [tm, tk], w_ref: [tk, tn], b_ref: [1, tn] (f32),
    # o_ref: [tm, tn], acc_ref: [tm, tn] f32 scratch, resident across K.
    k = pl.program_id(2)

    partial = jnp.dot(x_ref[...], w_ref[...], preferred_element_type=jnp.float32)

    # First K step writes directly: skips a useless zero-fill + read-of-zeros
    # (one full acc-tile vst+vld saved; matters on v5e's single store slot).
    @pl.when(k == 0)
    def _():
        acc_ref[...] = partial

    @pl.when(k > 0)
    def _():
        acc_ref[...] += partial

    # Epilogue once per output tile: bias broadcast + ReLU + lane-dense store.
    @pl.when(k == pl.num_programs(2) - 1)
    def _():
        y = acc_ref[...] + b_ref[...]
        o_ref[...] = jnp.maximum(y, 0.0).astype(o_ref.dtype)


def _plan_tiles(M, K, N, tm, tn, tk, in_itemsize, out_itemsize, sublane):
    """Clamp/shrink tiles to the aligned problem size and the VMEM budget."""
    Ma = _round_up(M, sublane)
    Ka = _round_up(K, 128)
    Na = _round_up(N, 128)

    # Small-batch clamp: tm covers the whole padded batch -> W streamed once.
    tm = min(tm, Ma)
    tn = min(tn, Na)
    tk = min(tk, Ka)

    def footprint(tm_, tn_, tk_):
        inputs = 2 * (tm_ * tk_ + tk_ * tn_) * in_itemsize  # double-buffered x/w
        outputs = 2 * tm_ * tn_ * out_itemsize              # double-buffered out
        acc = tm_ * tn_ * 4                                  # f32 accumulator
        bias = 2 * tn_ * 4
        return inputs + outputs + acc + bias

    # Shrink tk first, then tn, then tm until the footprint fits the budget.
    for _ in range(32):
        if footprint(tm, tn, tk) <= _VMEM_TILE_BUDGET:
            break
        if tk > 512:
            tk = _round_up(tk // 2, 128)
        elif tn > 512:
            tn = _round_up(tn // 2, 128)
        elif tm > sublane:
            tm = _round_up(max(tm // 2, sublane), sublane)
        elif tk > 128:
            tk = _round_up(tk // 2, 128)
        elif tn > 128:
            tn = _round_up(tn // 2, 128)
        else:
            break

    # v7x has 2 TensorCores: ensure >= 2 parallel (M,N) tiles when possible,
    # otherwise one core idles under ("parallel","parallel","arbitrary").
    if _cdiv(Ma, tm) * _cdiv(Na, tn) < 2 and tn >= 256 and Na >= 256:
        tn = _round_up(tn // 2, 128)

    return tm, tn, tk


@functools.partial(
    jax.jit, static_argnames=("tm", "tn", "tk", "compute_dtype", "out_dtype"))
def mlp_forward(x, w, b, *, tm=512, tn=1024, tk=2048,
                compute_dtype=jnp.bfloat16, out_dtype=None):
    """relu(x @ w + b).  x: [M, K], w: [K, N], b: [N]."""
    M, K = x.shape
    K2, N = w.shape
    assert K == K2 and b.shape == (N,)

    out_dtype = x.dtype if out_dtype is None else jnp.dtype(out_dtype)
    compute_dtype = x.dtype if compute_dtype is None else jnp.dtype(compute_dtype)

    in_itemsize = jnp.dtype(compute_dtype).itemsize
    sublane = max(8, 32 // in_itemsize)   # 8 for f32, 16 for bf16, 32 for 8-bit

    tm, tn, tk = _plan_tiles(M, K, N, tm, tn, tk,
                             in_itemsize, jnp.dtype(out_dtype).itemsize, sublane)

    Mp = _round_up(M, tm)
    Kp = _round_up(K, tk)
    Np = _round_up(N, tn)

    # Guarded cast/pad: no-ops when dtypes already match / shapes are aligned.
    # (Store w/b pre-cast & pre-padded upstream in production.)
    xp = x if x.dtype == compute_dtype else x.astype(compute_dtype)
    wp = w if w.dtype == compute_dtype else w.astype(compute_dtype)
    if (Mp, Kp) != (M, K):
        xp = jnp.pad(xp, ((0, Mp - M), (0, Kp - K)))
    if (Kp, Np) != (K, N):
        wp = jnp.pad(wp, ((0, Kp - K), (0, Np - N)))
    bp = b if b.dtype == jnp.float32 else b.astype(jnp.float32)
    if Np != N:
        bp = jnp.pad(bp, (0, Np - N))
    bp = bp.reshape(1, Np)

    grid = (Mp // tm, Np // tn, Kp // tk)

    out = pl.pallas_call(
        _mlp_kernel,
        out_shape=jax.ShapeDtypeStruct((Mp, Np), out_dtype),
        grid_spec=pltpu.PrefetchScalarGridSpec(
            num_scalar_prefetch=0,
            grid=grid,
            in_specs=[
                pl.BlockSpec((tm, tk), lambda i, j, k: (i, k)),
                pl.BlockSpec((tk, tn), lambda i, j, k: (k, j)),
                pl.BlockSpec((1, tn), lambda i, j, k: (0, j)),
            ],
            out_specs=pl.BlockSpec((tm, tn), lambda i, j, k: (i, j)),
            scratch_shapes=[pltpu.VMEM((tm, tn), jnp.float32)],
        ),
        compiler_params=pltpu.CompilerParams(
            dimension_semantics=("parallel", "parallel", "arbitrary"),
            vmem_limit_bytes=_VMEM_LIMIT_BYTES,
        ),
    )(xp, wp, bp)

    if (Mp, Np) != (M, N):
        out = out[:M, :N]
    return out


def init_linear_params(key, input_size, output_size):
    """Deterministic init matching nn.Linear default (uniform +/- 1/sqrt(in))."""
    kw, kb = jax.random.split(key)
    bound = 1.0 / math.sqrt(input_size)
    # PyTorch stores weight as [out, in]; we keep [in, out] for the kernel.
    w = jax.random.uniform(kw, (input_size, output_size), jnp.float32,
                           minval=-bound, maxval=bound)
    b = jax.random.uniform(kb, (output_size,), jnp.float32,
                           minval=-bound, maxval=bound)
    return w, b


if __name__ == "__main__":
    key = jax.random.PRNGKey(0)
    k_x, k_p, k_x2, k_p2 = jax.random.split(key, 4)

    # 1) Small shapes implied by the module (single-tile path), exact f32
    #    compute path for a tight reference check.
    batch, input_size, output_size = 8, 32, 16
    x = jax.random.normal(k_x, (batch, input_size), jnp.float32)
    w, b = init_linear_params(k_p, input_size, output_size)

    out = jax.block_until_ready(mlp_forward(x, w, b, compute_dtype=jnp.float32))
    ref = jnp.maximum(x @ w + b, 0.0)
    assert out.shape == (batch, output_size)
    assert jnp.allclose(out, ref, atol=1e-5, rtol=1e-5)

    # 2) Larger shapes: default bf16 MXU compute (f32 accumulate), multi-tile N
    #    (exercises the v7x 2-core grid split) and a real K accumulation loop.
    M2, K2, N2 = 256, 4096, 512
    x2 = jax.random.normal(k_x2, (M2, K2), jnp.float32)
    w2, b2 = init_linear_params(k_p2, K2, N2)

    out2 = jax.block_until_ready(mlp_forward(x2, w2, b2))   # bf16 compute default
    ref2 = jnp.maximum(x2 @ w2 + b2, 0.0)
    assert out2.shape == (M2, N2)
    # bf16 inputs / f32 accumulate: bounded rounding error vs. the f32 reference.
    assert jnp.allclose(out2, ref2, atol=5e-2, rtol=5e-2)

    print("KERNEL_OK")
</pallas_src>

<mosaic_0001>
module attributes {stable_mosaic.version = 11 : i64} {
  func.func @_mlp_kernel(%arg0: i32, %arg1: i32, %arg2: i32, %arg3: memref<8x128xf32, #tpu.memory_space<vmem>>, %arg4: memref<128x128xf32, #tpu.memory_space<vmem>>, %arg5: memref<1x128xf32, #tpu.memory_space<vmem>>, %arg6: memref<8x128xf32, #tpu.memory_space<vmem>>, %arg7: memref<8x128xf32, #tpu.memory_space<vmem>>) attributes {dimension_semantics = [#tpu.dimension_semantics<parallel>, #tpu.dimension_semantics<parallel>, #tpu.dimension_semantics<arbitrary>], iteration_bounds = array<i64: 1, 1, 1>, scalar_prefetch = 0 : i64, scratch_operands = 1 : i64, tpu.core_type = #tpu.core_type<tc>, window_params = [{transform_indices = @transform_0, window_bounds = array<i64: 8, 128>}, {transform_indices = @transform_1, window_bounds = array<i64: 128, 128>}, {transform_indices = @transform_2, window_bounds = array<i64: 1, 128>}, {transform_indices = @transform_3, window_bounds = array<i64: 8, 128>}]} {
    %c0 = arith.constant 0 : index
    %c0_0 = arith.constant 0 : index
    %0 = vector.load %arg3[%c0, %c0_0] : memref<8x128xf32, #tpu.memory_space<vmem>>, vector<8x128xf32>
    %c0_1 = arith.constant 0 : index
    %c0_2 = arith.constant 0 : index
    %1 = vector.load %arg4[%c0_1, %c0_2] : memref<128x128xf32, #tpu.memory_space<vmem>>, vector<128x128xf32>
    %cst = arith.constant dense<0.000000e+00> : vector<8x128xf32>
    %2 = tpu.matmul %0, %1, %cst {dimension_numbers = #tpu.dot_dimension_numbers<[1], [0], [0], [1], [0, 0, 1, 1], [], []>} : vector<8x128xf32>, vector<128x128xf32>, vector<8x128xf32> -> vector<8x128xf32>
    %c0_i32 = arith.constant 0 : i32
    %3 = arith.cmpi eq, %arg2, %c0_i32 : i32
    %4 = arith.extui %3 : i1 to i32
    %c0_i32_3 = arith.constant 0 : i32
    %5 = arith.cmpi ne, %4, %c0_i32_3 : i32
    scf.if %5 {
      %c0_8 = arith.constant 0 : index
      %c0_9 = arith.constant 0 : index
      %12 = vector.load %arg7[%c0_8, %c0_9] : memref<8x128xf32, #tpu.memory_space<vmem>>, vector<8x128xf32>
      tpu.vector_store %arg7[%c0_8, %c0_9], %2 {strides = array<i32>} : memref<8x128xf32, #tpu.memory_space<vmem>>, vector<8x128xf32>,
    } else {
    }
    %c0_i32_4 = arith.constant 0 : i32
    %6 = arith.cmpi sgt, %arg2, %c0_i32_4 : i32
    %7 = arith.extui %6 : i1 to i32
    %c0_i32_5 = arith.constant 0 : i32
    %8 = arith.cmpi ne, %7, %c0_i32_5 : i32
    scf.if %8 {
      %c0_8 = arith.constant 0 : index
      %c0_9 = arith.constant 0 : index
      %12 = vector.load %arg7[%c0_8, %c0_9] : memref<8x128xf32, #tpu.memory_space<vmem>>, vector<8x128xf32>
      %13 = arith.addf %12, %2 : vector<8x128xf32>
      %c0_10 = arith.constant 0 : index
      %c0_11 = arith.constant 0 : index
      %14 = vector.load %arg7[%c0_10, %c0_11] : memref<8x128xf32, #tpu.memory_space<vmem>>, vector<8x128xf32>
      tpu.vector_store %arg7[%c0_10, %c0_11], %13 {strides = array<i32>} : memref<8x128xf32, #tpu.memory_space<vmem>>, vector<8x128xf32>,
    } else {
    }
    %c0_i32_6 = arith.constant 0 : i32
    %9 = arith.cmpi eq, %arg2, %c0_i32_6 : i32
    %10 = arith.extui %9 : i1 to i32
    %c0_i32_7 = arith.constant 0 : i32
    %11 = arith.cmpi ne, %10, %c0_i32_7 : i32
    scf.if %11 {
      %c0_8 = arith.constant 0 : index
      %c0_9 = arith.constant 0 : index
      %12 = vector.load %arg7[%c0_8, %c0_9] : memref<8x128xf32, #tpu.memory_space<vmem>>, vector<8x128xf32>
      %c0_10 = arith.constant 0 : index
      %c0_11 = arith.constant 0 : index
      %13 = vector.load %arg5[%c0_10, %c0_11] : memref<1x128xf32, #tpu.memory_space<vmem>>, vector<1x128xf32>
      %14 = vector.broadcast %13 : vector<1x128xf32> to vector<8x128xf32>
      %15 = arith.addf %12, %14 : vector<8x128xf32>
      %cst_12 = arith.constant 0.000000e+00 : f32
      %16 = vector.broadcast %cst_12 : f32 to vector<8x128xf32>
      %17 = arith.maximumf %15, %16 : vector<8x128xf32>
      %c0_13 = arith.constant 0 : index
      %c0_14 = arith.constant 0 : index
      %18 = vector.load %arg6[%c0_13, %c0_14] : memref<8x128xf32, #tpu.memory_space<vmem>>, vector<8x128xf32>
      tpu.vector_store %arg6[%c0_13, %c0_14], %17 {strides = array<i32>} : memref<8x128xf32, #tpu.memory_space<vmem>>, vector<8x128xf32>,
    } else {
    }
    return
  }
  func.func @transform_0(%arg0: i32, %arg1: i32, %arg2: i32) -> (i32, i32) {
    %c0_i32 = arith.constant 0 : i32
    return %arg0, %arg2 : i32, i32
  }
  func.func @transform_1(%arg0: i32, %arg1: i32, %arg2: i32) -> (i32, i32) {
    %c0_i32 = arith.constant 0 : i32
    return %arg2, %arg1 : i32, i32
  }
  func.func @transform_2(%arg0: i32, %arg1: i32, %arg2: i32) -> (i32, i32) {
    %c0_i32 = arith.constant 0 : i32
    %c0_i32_0 = arith.constant 0 : i32
    return %c0_i32, %arg1 : i32, i32
  }
  func.func @transform_3(%arg0: i32, %arg1: i32, %arg2: i32) -> (i32, i32) {
    %c0_i32 = arith.constant 0 : i32
    return %arg0, %arg1 : i32, i32
  }
}

</mosaic_0001>

<llo_original>
// kernel: mlp_forward.1
$region0: #{mlp_forward.1}
  #allocation0 [shape = 'u32[]', space=smem, size = 0x4, offset = 0x4, fixed_abs, tag = 'smem constant byte address 0x4 - core index']
  #allocation1 [shape = 'u32[144,128]{1,0:T(1,128)}', space=vmem, size = 0x12000, scoped, tag = 'internal scratch']
  #allocation2 [shape = 'f32[8,128]{1,0:T(8,128)}', space=vmem, size = 0x1000, scoped, tag = 'scratch operand']
  %s0 = inlined_call_operand.vmem [shape: f32[8,128], index: 0, kind: input, shape index: {}]
  %s1 = inlined_call_operand.vmem [shape: f32[128,128], index: 1, kind: input, shape index: {}]
  %s2 = inlined_call_operand.vmem [shape: f32[1,128], index: 2, kind: input, shape index: {}]
  %s3 = inlined_call_operand.hbm [shape: f32[8,128], index: 3, kind: output, shape index: {}]
  %s4 = sld [smem:[#allocation0]]
  $region34: #{mlp_forward.1} parent=0
    _
  %s6 = ssub.s32 1, %s4
  %s7 = scalar_select 0, %s6, %s4
  $region1: #{mlp_forward.1} parent=0
    #allocation3 [shape = 'u8[4096]{0}', space=vmem, size = 0x1000, scoped, tag = 'output window, operand 0, single buffered']
    #allocation4 [shape = 's32[1]{0}', space=sflag, size = 0x4, scoped, tag = 'scoped memory for mlp_forward.1']
    %8 = vsyncpa [#allocation4], 0
    // Predicated region
    $region2: #{mlp_forward.1} parent=1 // pred_check
      _
    $region3: #{mlp_forward.1} parent=1 // pred_check_branch
      %10 = sbr.rel (0) target = $region5
    $region4: #{mlp_forward.1} parent=1 // pred_region
      _
    $region5: #{mlp_forward.1} parent=1 // pred_fallthru
      _
    // Predicated region
    $region6: #{mlp_forward.1} parent=1 // pred_check
      _
    $region7: #{mlp_forward.1} parent=1 // pred_check_branch
      %12 = sbr.rel (0) target = $region9
    $region8: #{mlp_forward.1} parent=1 // pred_region
      _
    $region9: #{mlp_forward.1} parent=1 // pred_fallthru
      _
    // Predicated region
    $region10: #{mlp_forward.1} parent=1 // pred_check
      _
    $region11: #{mlp_forward.1} parent=1 // pred_check_branch
      %14 = sbr.rel (0) target = $region13
    $region12: #{mlp_forward.1} parent=1 // pred_region
      _
    $region13: #{mlp_forward.1} parent=1 // pred_fallthru
      _
    %v15 = vld [vmem:[%s0] sm:$0xff]
    %v16 = vld [vmem:[%s1] sm:$0xff]
    %v17 = vld [vmem:[%s1 + $0x8] sm:$0xff]
    %v18 = vld [vmem:[%s1 + $0x10] sm:$0xff]
    %v19 = vld [vmem:[%s1 + $0x18] sm:$0xff]
    %v20 = vld [vmem:[%s1 + $0x20] sm:$0xff]
    %v21 = vld [vmem:[%s1 + $0x28] sm:$0xff]
    %v22 = vld [vmem:[%s1 + $0x30] sm:$0xff]
    %v23 = vld [vmem:[%s1 + $0x38] sm:$0xff]
    %v24 = vld [vmem:[%s1 + $0x40] sm:$0xff]
    %v25 = vld [vmem:[%s1 + $0x48] sm:$0xff]
    %v26 = vld [vmem:[%s1 + $0x50] sm:$0xff]
    %v27 = vld [vmem:[%s1 + $0x58] sm:$0xff]
    %v28 = vld [vmem:[%s1 + $0x60] sm:$0xff]
    %v29 = vld [vmem:[%s1 + $0x68] sm:$0xff]
    %v30 = vld [vmem:[%s1 + $0x70] sm:$0xff]
    %v31 = vld [vmem:[%s1 + $0x78] sm:$0xff]
    %32 = vmatprep.subr.mxu0 0.0
    %33 = vmatpush1.msra.mxu0 %v16
    %34 = vmatprep.subr.mxu0 0.0
    %35 = vmatpush1.msra.mxu0 %v17
    %36 = vmatprep.subr.mxu0 0.0
    %37 = vmatpush1.msra.mxu0 %v18
    %38 = vmatprep.subr.mxu0 0.0
    %39 = vmatpush1.msra.mxu0 %v19
    %40 = vmatprep.subr.mxu0 0.0
    %41 = vmatpush1.msra.mxu0 %v20
    %42 = vmatprep.subr.mxu0 0.0
    %43 = vmatpush1.msra.mxu0 %v21
    %44 = vmatprep.subr.mxu0 0.0
    %45 = vmatpush1.msra.mxu0 %v22
    %46 = vmatprep.subr.mxu0 0.0
    %47 = vmatpush1.msra.mxu0 %v23
    %48 = vmatprep.subr.mxu0 0.0
    %49 = vmatpush1.msra.mxu0 %v24
    %50 = vmatprep.subr.mxu0 0.0
    %51 = vmatpush1.msra.mxu0 %v25
    %52 = vmatprep.subr.mxu0 0.0
    %53 = vmatpush1.msra.mxu0 %v26
    %54 = vmatprep.subr.mxu0 0.0
    %55 = vmatpush1.msra.mxu0 %v27
    %56 = vmatprep.subr.mxu0 0.0
    %57 = vmatpush1.msra.mxu0 %v28
    %58 = vmatprep.subr.mxu0 0.0
    %59 = vmatpush1.msra.mxu0 %v29
    %60 = vmatprep.subr.mxu0 0.0
    %61 = vmatpush1.msra.mxu0 %v30
    %62 = vmatprep.subr.mxu0 0.0
    %63 = vmatpush1.msra.mxu0 %v31
    %64 = vmatprep.subr.mxu0 0.0
    %65 = vmatpush1.msra.mxu0 0.0
    %66 = vmatprep.subr.mxu0 0.0
    %67 = vmatpush1.msra.mxu0 0.0
    %68 = vmatprep.subr.mxu0 0.0
    %69 = vmatpush1.msra.mxu0 0.0
    %70 = vmatprep.subr.mxu0 0.0
    %71 = vmatpush1.msra.mxu0 0.0
    %72 = vmatprep.subr.mxu0 0.0
    %73 = vmatpush1.msra.mxu0 0.0
    %74 = vmatprep.subr.mxu0 0.0
    %75 = vmatpush1.msra.mxu0 0.0
    %76 = vmatprep.subr.mxu0 0.0
    %77 = vmatpush1.msra.mxu0 0.0
    %78 = vmatprep.subr.mxu0 0.0
    %79 = vmatpush1.msra.mxu0 0.0
    %80 = vmatprep.subr.mxu0 0.0
    %81 = vmatpush1.msra.mxu0 0.0
    %82 = vmatprep.subr.mxu0 0.0
    %83 = vmatpush1.msra.mxu0 0.0
    %84 = vmatprep.subr.mxu0 0.0
    %85 = vmatpush1.msra.mxu0 0.0
    %86 = vmatprep.subr.mxu0 0.0
    %87 = vmatpush1.msra.mxu0 0.0
    %88 = vmatprep.subr.mxu0 0.0
    %89 = vmatpush1.msra.mxu0 0.0
    %90 = vmatprep.subr.mxu0 0.0
    %91 = vmatpush1.msra.mxu0 0.0
    %92 = vmatprep.subr.mxu0 0.0
    %93 = vmatpush1.msra.mxu0 0.0
    %94 = vmatprep.subr.mxu0 0.0
    %95 = vmatpush1.msra.mxu0 0.0
    %96 = vmatprep.mubr.f32.mxu0 0.0
    %97 = vmatmul.mubr.f32.gmra.mrb[0].mxu0 %v15
    %v98 = vpop.f32.mrb[0].mxu0
    %v99 = vadd.f32 0.0, %v98
    %v100 = vpop.f32.mrb[0].mxu0
    %101 = vdwg.mxu0
    %p102 = scmp.eq.s32.totalorder 0, 0
    // Predicated region
    $region14: #{mlp_forward.1} parent=1 // pred_check
      %p103 = pneg %p102
    $region15: #{mlp_forward.1} parent=1 // pred_check_branch
      %105 = sbr.rel (%p103) target = $region17
    $region16: #{mlp_forward.1} parent=1 // pred_region
      %106 = vst [vmem:[#allocation2] sm:$0xff] %v99
    $region17: #{mlp_forward.1} parent=1 // pred_fallthru
      _
    %p107 = scmp.gt.s32.totalorder 0, 0
    // Predicated region
    $region18: #{mlp_forward.1} parent=1 // pred_check
      %p108 = pneg %p107
    $region19: #{mlp_forward.1} parent=1 // pred_check_branch
      %110 = sbr.rel (%p108) target = $region21
    $region20: #{mlp_forward.1} parent=1 // pred_region
      %v111 = vld [vmem:[#allocation2] sm:$0xff]
      %v112 = vadd.f32 %v111, %v99
      %113 = vst [vmem:[#allocation2] sm:$0xff] %v112
    $region21: #{mlp_forward.1} parent=1 // pred_fallthru
      _
    // Predicated region
    $region22: #{mlp_forward.1} parent=1 // pred_check
      %p114 = pneg %p102
    $region23: #{mlp_forward.1} parent=1 // pred_check_branch
      %116 = sbr.rel (%p114) target = $region25
    $region24: #{mlp_forward.1} parent=1 // pred_region
      %v117 = vld [vmem:[#allocation2] sm:$0xff]
      %v118 = vld [vmem:[%s2] sm:$0x1]
      %v120 = vlaneseq
      %v121 = vshrl.u32 %v120, 7
      %v122 = vsub.s32 0, %v121
      %v123 = vrot.slane %v118, %v122
      %v125 = vadd.f32 %v117, %v123
      %v126 = vmax.f32 %v125, 0.0
      %127 = vst [vmem:[#allocation3] sm:$0xff] %v126
    $region25: #{mlp_forward.1} parent=1 // pred_fallthru
      _
    // Predicated region
    $region26: #{mlp_forward.1} parent=1 // pred_check
      _
    $region27: #{mlp_forward.1} parent=1 // pred_check_branch
      %129 = sbr.rel (0) target = $region29
    $region28: #{mlp_forward.1} parent=1 // pred_region
      %s131 = ssub.s32 128, 128
      %132 = vsyncadd [#allocation4], %s131
      %s134 = sshll.u32 [#allocation3], 4
      %s135 = int_to_ptr.vmem [resolvable:$true] %s134
      %137 = dma.vmem_to_hbm [thread:$0]  %s135, 128, %s3, [#allocation4]
    $region29: #{mlp_forward.1} parent=1 // pred_fallthru
      _
    // Predicated region
    $region30: #{mlp_forward.1} parent=1 // pred_check
      _
    $region31: #{mlp_forward.1} parent=1 // pred_check_branch
      %139 = sbr.rel (0) target = $region33
    $region32: #{mlp_forward.1} parent=1 // pred_region
      %140 = dma.done [#allocation4], 128
    $region33: #{mlp_forward.1} parent=1 // pred_fallthru
      _
    %141 = vsyncpa [#allocation4], 1

</llo_original>
